<compile_context>
chip_gen: v5e
topology: v5e:2x2
jax: 0.10.0
libtpu: 0.0.40
codegen_flags: <defaults>
</compile_context>

<pallas_src>
import jax
import jax.numpy as jnp
from jax.experimental import pallas as pl
from jax.experimental.pallas import tpu as pltpu


# ---------------------------------------------------------------------------
# Pallas kernel: FP-wrapped Linear forward (tiled over M, N, K)
# ---------------------------------------------------------------------------
def _fp_linear_kernel(x_ref, w_ref, b_ref, o_ref):
    k = pl.program_id(2)

    # Output block index is constant across k -> o_ref is resident and acts
    # as the f32 accumulator (no separate scratch).
    @pl.when(k == 0)
    def _():
        o_ref[...] = jnp.zeros_like(o_ref)

    # x tile (tm, tk) half  @  W tile (tk, tn) half  ->  f32 accumulate.
    # W is stored pre-transposed (K, N): standard MXU orientation, no relayout.
    o_ref[...] += jnp.dot(x_ref[...], w_ref[...],
                          preferred_element_type=jnp.float32)

    # Epilogue on the last K step: single half round-trip + half bias + fp32.
    @pl.when(k == pl.num_programs(2) - 1)
    def _():
        half = w_ref.dtype
        y_half = o_ref[...].astype(half) + b_ref[...]   # bias add in half
        o_ref[...] = y_half.astype(jnp.float32)         # return_fp32=True


def _round_up(x, m):
    return ((x + m - 1) // m) * m


def _vmem_limit_bytes(tm, tn, tk, half_bytes):
    """Scoped-VMEM budget derived from the actual double-buffered tiles."""
    x_b = 2 * tm * tk * half_bytes
    w_b = 2 * tk * tn * half_bytes
    b_b = 2 * 8 * tn * half_bytes          # bias row, sublane-padded
    o_b = 2 * tm * tn * 4                  # f32 output / accumulator
    need = x_b + w_b + b_b + o_b
    # 2x headroom for Mosaic internal scratch; cap at 32 MiB so the same
    # setting is valid on v7x (64 MiB/TC) as well as v5e/v6e (128 MiB).
    return int(min(32 << 20, max(16 << 20, 2 * need)))


def fp_wrapper_linear(x_half, w_t_pad, b_pad, *, block_m=512, tn=None, tk=None):
    """Forward of FPWrapper(nn.Linear(D_in, D_out)).

    x_half  : (B, D_in)   already cast to module half precision (bf16/f32)
    w_t_pad : (Kp, Np)    pre-transposed, pre-padded half-precision weight
    b_pad   : (1, Np)     pre-padded half-precision bias
    returns (Bp, Np) float32   (caller slices off padding)
    """
    B, D_in = x_half.shape
    Kp, Np = w_t_pad.shape
    half_bytes = jnp.dtype(w_t_pad.dtype).itemsize

    # M tile: bf16 sublane pack -> multiples of 16.
    tm = min(block_m, _round_up(B, 16))
    Bp = _round_up(B, tm)

    # Zero-pad x remainders (zeros contribute nothing to the matmul).
    if Bp != B or Kp != D_in:
        x_half = jnp.pad(x_half, ((0, Bp - B), (0, Kp - D_in)))

    grid = (Bp // tm, Np // tn, Kp // tk)

    return pl.pallas_call(
        _fp_linear_kernel,
        out_shape=jax.ShapeDtypeStruct((Bp, Np), jnp.float32),
        grid_spec=pltpu.PrefetchScalarGridSpec(
            num_scalar_prefetch=0,
            grid=grid,
            in_specs=[
                pl.BlockSpec((tm, tk), lambda i, j, k: (i, k)),   # x  (M,K)
                pl.BlockSpec((tk, tn), lambda i, j, k: (k, j)),   # W  (K,N)
                pl.BlockSpec((1, tn), lambda i, j, k: (0, j)),    # bias
            ],
            out_specs=pl.BlockSpec((tm, tn), lambda i, j, k: (i, j)),
        ),
        compiler_params=pltpu.CompilerParams(
            dimension_semantics=("parallel", "parallel", "arbitrary"),
            vmem_limit_bytes=_vmem_limit_bytes(tm, tn, tk, half_bytes),
        ),
    )(x_half, w_t_pad, b_pad)


# ---------------------------------------------------------------------------
# FPWrapper "module": deterministic parameter init + forward
# ---------------------------------------------------------------------------
_PRECISION_TO_DTYPE = {
    "16": jnp.bfloat16,   # torch.float16 -> TPU-native half
    "32": jnp.float32,
    "64": jnp.float32,    # TODO(synk): no f64 on TPU vector units
}


class FPWrapperLinear:
    def __init__(self, d_in, d_out, precision=16, convert_input=True,
                 return_fp32=True, key=None, block_n=512, block_k=1024):
        self.dtype = _PRECISION_TO_DTYPE[str(precision)]
        self.convert_input = convert_input
        self.return_fp32 = return_fp32
        self.d_in, self.d_out = d_in, d_out

        key = jax.random.PRNGKey(0) if key is None else key
        kw, kb = jax.random.split(key)
        # torch.nn.Linear default init: U(-1/sqrt(fan_in), 1/sqrt(fan_in))
        bound = 1.0 / (d_in ** 0.5)
        w32 = jax.random.uniform(kw, (d_out, d_in), jnp.float32, -bound, bound)
        b32 = jax.random.uniform(kb, (d_out,), jnp.float32, -bound, bound)

        # module.to(self.dtype): parameters stored in half precision.
        self.w = w32.astype(self.dtype)          # (D_out, D_in)  reference copy
        self.b = b32.astype(self.dtype)          # (D_out,)

        # --- static parameter prep: transpose + pad ONCE at init -----------
        self.tn = min(block_n, _round_up(d_out, 128))
        self.tk = min(block_k, _round_up(d_in, 128))
        Np = _round_up(d_out, self.tn)
        Kp = _round_up(d_in, self.tk)
        # If all of N would land in a single tile, split it so both v7x
        # TensorCores get work (only when the split stays 128-aligned).
        if Np // self.tn == 1 and Np >= 256 and Np % 256 == 0:
            self.tn = Np // 2
        self.Np, self.Kp = Np, Kp

        w_t = self.w.T                                              # (D_in, D_out)
        self.w_t_pad = jnp.pad(w_t, ((0, Kp - d_in), (0, Np - d_out)))
        self.b_pad = jnp.pad(self.b, (0, Np - d_out)).reshape(1, Np)

    def __call__(self, x):
        # convert_input=True: cast fp32 input to module precision once here.
        x_half = x.astype(self.dtype) if self.convert_input else x
        out = fp_wrapper_linear(x_half, self.w_t_pad, self.b_pad,
                                tn=self.tn, tk=self.tk)
        out = out[:x.shape[0], :self.d_out]      # drop padding
        return out                               # return_fp32=True (f32 out)


def _reference(x, w, b):
    """Pure-JAX reference with identical numerics to the kernel epilogue."""
    half = w.dtype
    acc = jnp.dot(x.astype(half), w.T,
                  preferred_element_type=jnp.float32)
    return (acc.astype(half) + b).astype(jnp.float32)


# ---------------------------------------------------------------------------
if __name__ == "__main__":
    key = jax.random.PRNGKey(0)
    k_x1, k_x2, k_p1, k_p2 = jax.random.split(key, 4)

    # Case 1: aligned small shapes (single grid step).
    B, D_in, D_out = 8, 128, 128
    x1 = jax.random.normal(k_x1, (B, D_in), dtype=jnp.float32)
    mod1 = FPWrapperLinear(D_in, D_out, precision=16, key=k_p1)
    out1 = jax.block_until_ready(mod1(x1))
    ref1 = _reference(x1, mod1.w, mod1.b)
    assert out1.shape == (B, D_out) and out1.dtype == jnp.float32
    assert jnp.allclose(out1, ref1, atol=1e-2, rtol=1e-2)

    # Case 2: non-aligned shapes exercising the padding path.
    B2, D_in2, D_out2 = 5, 96, 40
    x2 = jax.random.normal(k_x2, (B2, D_in2), dtype=jnp.float32)
    mod2 = FPWrapperLinear(D_in2, D_out2, precision=16, key=k_p2)
    out2 = jax.block_until_ready(mod2(x2))
    ref2 = _reference(x2, mod2.w, mod2.b)
    assert out2.shape == (B2, D_out2) and out2.dtype == jnp.float32
    assert jnp.allclose(out2, ref2, atol=1e-2, rtol=1e-2)

    # Case 3: multi-tile reduction + N-split (exercises the k-accumulate path).
    B3, D_in3, D_out3 = 48, 384, 256
    k_x3, k_p3 = jax.random.split(k_p2)
    x3 = jax.random.normal(k_x3, (B3, D_in3), dtype=jnp.float32)
    mod3 = FPWrapperLinear(D_in3, D_out3, precision=16, key=k_p3,
                           block_n=128, block_k=128)
    out3 = jax.block_until_ready(mod3(x3))
    ref3 = _reference(x3, mod3.w, mod3.b)
    assert out3.shape == (B3, D_out3) and out3.dtype == jnp.float32
    assert jnp.allclose(out3, ref3, atol=1e-2, rtol=1e-2)

    print("KERNEL_OK")
</pallas_src>

<mosaic_0001>
module attributes {stable_mosaic.version = 11 : i64} {
  func.func @_fp_linear_kernel(%arg0: i32, %arg1: i32, %arg2: i32, %arg3: memref<16x128xbf16, #tpu.memory_space<vmem>>, %arg4: memref<128x128xbf16, #tpu.memory_space<vmem>>, %arg5: memref<1x128xbf16, #tpu.memory_space<vmem>>, %arg6: memref<16x128xf32, #tpu.memory_space<vmem>>) attributes {dimension_semantics = [#tpu.dimension_semantics<parallel>, #tpu.dimension_semantics<parallel>, #tpu.dimension_semantics<arbitrary>], iteration_bounds = array<i64: 1, 1, 1>, scalar_prefetch = 0 : i64, scratch_operands = 0 : i64, tpu.core_type = #tpu.core_type<tc>, window_params = [{transform_indices = @transform_0, window_bounds = array<i64: 16, 128>}, {transform_indices = @transform_1, window_bounds = array<i64: 128, 128>}, {transform_indices = @transform_2, window_bounds = array<i64: 1, 128>}, {transform_indices = @transform_3, window_bounds = array<i64: 16, 128>}]} {
    %c0_i32 = arith.constant 0 : i32
    %0 = arith.cmpi eq, %arg2, %c0_i32 : i32
    %1 = arith.extui %0 : i1 to i32
    %c0_i32_0 = arith.constant 0 : i32
    %2 = arith.cmpi ne, %1, %c0_i32_0 : i32
    scf.if %2 {
      %cst_10 = arith.constant 0.000000e+00 : f32
      %12 = vector.broadcast %cst_10 : f32 to vector<16x128xf32>
      %c0_11 = arith.constant 0 : index
      %c0_12 = arith.constant 0 : index
      %13 = vector.load %arg6[%c0_11, %c0_12] : memref<16x128xf32, #tpu.memory_space<vmem>>, vector<16x128xf32>
      tpu.vector_store %arg6[%c0_11, %c0_12], %12 {strides = array<i32>} : memref<16x128xf32, #tpu.memory_space<vmem>>, vector<16x128xf32>,
    } else {
    }
    %c0 = arith.constant 0 : index
    %c0_1 = arith.constant 0 : index
    %3 = vector.load %arg6[%c0, %c0_1] : memref<16x128xf32, #tpu.memory_space<vmem>>, vector<16x128xf32>
    %c0_2 = arith.constant 0 : index
    %c0_3 = arith.constant 0 : index
    %4 = vector.load %arg3[%c0_2, %c0_3] : memref<16x128xbf16, #tpu.memory_space<vmem>>, vector<16x128xbf16>
    %c0_4 = arith.constant 0 : index
    %c0_5 = arith.constant 0 : index
    %5 = vector.load %arg4[%c0_4, %c0_5] : memref<128x128xbf16, #tpu.memory_space<vmem>>, vector<128x128xbf16>
    %cst = arith.constant dense<0.000000e+00> : vector<16x128xf32>
    %6 = tpu.matmul %4, %5, %cst {dimension_numbers = #tpu.dot_dimension_numbers<[1], [0], [0], [1], [0, 0, 1, 1], [], []>} : vector<16x128xbf16>, vector<128x128xbf16>, vector<16x128xf32> -> vector<16x128xf32>
    %7 = arith.addf %3, %6 : vector<16x128xf32>
    %c0_6 = arith.constant 0 : index
    %c0_7 = arith.constant 0 : index
    %8 = vector.load %arg6[%c0_6, %c0_7] : memref<16x128xf32, #tpu.memory_space<vmem>>, vector<16x128xf32>
    tpu.vector_store %arg6[%c0_6, %c0_7], %7 {strides = array<i32>} : memref<16x128xf32, #tpu.memory_space<vmem>>, vector<16x128xf32>,
    %c0_i32_8 = arith.constant 0 : i32
    %9 = arith.cmpi eq, %arg2, %c0_i32_8 : i32
    %10 = arith.extui %9 : i1 to i32
    %c0_i32_9 = arith.constant 0 : i32
    %11 = arith.cmpi ne, %10, %c0_i32_9 : i32
    scf.if %11 {
      %c0_10 = arith.constant 0 : index
      %c0_11 = arith.constant 0 : index
      %12 = vector.load %arg6[%c0_10, %c0_11] : memref<16x128xf32, #tpu.memory_space<vmem>>, vector<16x128xf32>
      %13 = arith.truncf %12 : vector<16x128xf32> to vector<16x128xbf16>
      %c0_12 = arith.constant 0 : index
      %c0_13 = arith.constant 0 : index
      %14 = vector.load %arg5[%c0_12, %c0_13] : memref<1x128xbf16, #tpu.memory_space<vmem>>, vector<1x128xbf16>
      %15 = vector.broadcast %14 : vector<1x128xbf16> to vector<16x128xbf16>
      %16 = arith.addf %13, %15 : vector<16x128xbf16>
      %17 = arith.extf %16 : vector<16x128xbf16> to vector<16x128xf32>
      %c0_14 = arith.constant 0 : index
      %c0_15 = arith.constant 0 : index
      %18 = vector.load %arg6[%c0_14, %c0_15] : memref<16x128xf32, #tpu.memory_space<vmem>>, vector<16x128xf32>
      tpu.vector_store %arg6[%c0_14, %c0_15], %17 {strides = array<i32>} : memref<16x128xf32, #tpu.memory_space<vmem>>, vector<16x128xf32>,
    } else {
    }
    return
  }
  func.func @transform_0(%arg0: i32, %arg1: i32, %arg2: i32) -> (i32, i32) {
    %c0_i32 = arith.constant 0 : i32
    return %arg0, %arg2 : i32, i32
  }
  func.func @transform_1(%arg0: i32, %arg1: i32, %arg2: i32) -> (i32, i32) {
    %c0_i32 = arith.constant 0 : i32
    return %arg2, %arg1 : i32, i32
  }
  func.func @transform_2(%arg0: i32, %arg1: i32, %arg2: i32) -> (i32, i32) {
    %c0_i32 = arith.constant 0 : i32
    %c0_i32_0 = arith.constant 0 : i32
    return %c0_i32, %arg1 : i32, i32
  }
  func.func @transform_3(%arg0: i32, %arg1: i32, %arg2: i32) -> (i32, i32) {
    %c0_i32 = arith.constant 0 : i32
    return %arg0, %arg1 : i32, i32
  }
}

</mosaic_0001>

<llo_original>
// kernel: tpu_custom_call.1
$region0: #{tpu_custom_call.1}
  #allocation0 [shape = 'u32[]', space=smem, size = 0x4, offset = 0x4, fixed_abs, tag = 'smem constant byte address 0x4 - core index']
  #allocation1 [shape = 'u32[72,128]{1,0:T(1,128)}', space=vmem, size = 0x9000, scoped, tag = 'internal scratch']
  %s0 = inlined_call_operand.hbm [shape: bf16[16,128], index: 0, kind: input, shape index: {}]
  %s1 = inlined_call_operand.hbm [shape: bf16[128,128], index: 1, kind: input, shape index: {}]
  %s2 = inlined_call_operand.vmem [shape: bf16[1,128], index: 2, kind: input, shape index: {}]
  %s3 = inlined_call_operand.hbm [shape: f32[16,128], index: 3, kind: output, shape index: {}]
  %s4 = sld [smem:[#allocation0]]
  $region38: #{tpu_custom_call.1} parent=0
    _
  %s6 = ssub.s32 1, %s4
  %s7 = scalar_select 0, %s6, %s4
  $region1: #{tpu_custom_call.1} parent=0
    #allocation2 [shape = 'u8[4096]{0}', space=vmem, size = 0x1000, scoped, tag = 'input window, operand 0, single buffered']
    #allocation3 [shape = 's32[1]{0}', space=sflag, size = 0x4, scoped, tag = 'scoped memory for tpu_custom_call.1']
    #allocation4 [shape = 's32[1]{0}', space=sflag, size = 0x4, scoped, tag = 'scoped memory for tpu_custom_call.1']
    #allocation5 [shape = 'u8[32768]{0}', space=vmem, size = 0x8000, scoped, tag = 'input window, operand 1, single buffered']
    #allocation6 [shape = 's32[1]{0}', space=sflag, size = 0x4, scoped, tag = 'scoped memory for tpu_custom_call.1']
    #allocation7 [shape = 'u8[8192]{0}', space=vmem, size = 0x2000, scoped, tag = 'output window, operand 0, single buffered']
    %8 = vsyncpa [#allocation3], 0
    %9 = vsyncpa [#allocation6], 0
    %10 = vsyncpa [#allocation4], 0
    // Predicated region
    $region2: #{tpu_custom_call.1} parent=1 // pred_check
      _
    $region3: #{tpu_custom_call.1} parent=1 // pred_check_branch
      %12 = sbr.rel (0) target = $region5
    $region4: #{tpu_custom_call.1} parent=1 // pred_region
      %14 = vsyncadd [#allocation3], 0
      %s15 = sshll.u32 %s0, 4
      %s16 = int_to_ptr.hbm [resolvable:$true] %s15
      %s17 = sshll.u32 [#allocation2], 4
      %s18 = int_to_ptr.vmem [resolvable:$true] %s17
      %23 = dma.hbm_to_vmem [thread:$0]  %s16, 128, %s18, [#allocation3], 64, 64, 4
    $region5: #{tpu_custom_call.1} parent=1 // pred_fallthru
      _
    // Predicated region
    $region6: #{tpu_custom_call.1} parent=1 // pred_check
      _
    $region7: #{tpu_custom_call.1} parent=1 // pred_check_branch
      %25 = sbr.rel (0) target = $region9
    $region8: #{tpu_custom_call.1} parent=1 // pred_region
      %27 = vsyncadd [#allocation6], 0
      %s28 = sshll.u32 %s1, 4
      %s29 = int_to_ptr.hbm [resolvable:$true] %s28
      %s30 = sshll.u32 [#allocation5], 4
      %s31 = int_to_ptr.vmem [resolvable:$true] %s30
      %36 = dma.hbm_to_vmem [thread:$0]  %s29, 1024, %s31, [#allocation6], 64, 64, 4
    $region9: #{tpu_custom_call.1} parent=1 // pred_fallthru
      _
    // Predicated region
    $region10: #{tpu_custom_call.1} parent=1 // pred_check
      _
    $region11: #{tpu_custom_call.1} parent=1 // pred_check_branch
      %38 = sbr.rel (0) target = $region13
    $region12: #{tpu_custom_call.1} parent=1 // pred_region
      _
    $region13: #{tpu_custom_call.1} parent=1 // pred_fallthru
      _
    // Predicated region
    $region14: #{tpu_custom_call.1} parent=1 // pred_check
      _
    $region15: #{tpu_custom_call.1} parent=1 // pred_check_branch
      %40 = sbr.rel (0) target = $region17
    $region16: #{tpu_custom_call.1} parent=1 // pred_region
      %42 = dma.done [#allocation3], 128
    $region17: #{tpu_custom_call.1} parent=1 // pred_fallthru
      _
    // Predicated region
    $region18: #{tpu_custom_call.1} parent=1 // pred_check
      _
    $region19: #{tpu_custom_call.1} parent=1 // pred_check_branch
      %44 = sbr.rel (0) target = $region21
    $region20: #{tpu_custom_call.1} parent=1 // pred_region
      %46 = dma.done [#allocation6], 1024
    $region21: #{tpu_custom_call.1} parent=1 // pred_fallthru
      _
    %p47 = scmp.eq.s32.totalorder 0, 0
    // Predicated region
    $region22: #{tpu_custom_call.1} parent=1 // pred_check
      %p48 = pneg %p47
    $region23: #{tpu_custom_call.1} parent=1 // pred_check_branch
      %50 = sbr.rel (%p48) target = $region25
    $region24: #{tpu_custom_call.1} parent=1 // pred_region
      %51 = vst [vmem:[#allocation7] sm:$0xff] 0.0
      %52 = vst [vmem:[#allocation7 + $0x8] sm:$0xff] 0.0
    $region25: #{tpu_custom_call.1} parent=1 // pred_fallthru
      _
    %v53 = vld [vmem:[#allocation7] sm:$0xff]
    %v54 = vld [vmem:[#allocation7 + $0x8] sm:$0xff]
    %v55 = vld [vmem:[#allocation2] sm:$0xf]
    %v56 = vld [vmem:[#allocation2 + $0x4] sm:$0xf]
    %v57 = vld [vmem:[#allocation5] sm:$0xf]
    %v58 = vld [vmem:[#allocation5 + $0x4] sm:$0xf]
    %v59 = vld [vmem:[#allocation5 + $0x8] sm:$0xf]
    %v60 = vld [vmem:[#allocation5 + $0xc] sm:$0xf]
    %v61 = vld [vmem:[#allocation5 + $0x10] sm:$0xf]
    %v62 = vld [vmem:[#allocation5 + $0x14] sm:$0xf]
    %v63 = vld [vmem:[#allocation5 + $0x18] sm:$0xf]
    %v64 = vld [vmem:[#allocation5 + $0x1c] sm:$0xf]
    %v65 = vld [vmem:[#allocation5 + $0x20] sm:$0xf]
    %v66 = vld [vmem:[#allocation5 + $0x24] sm:$0xf]
    %v67 = vld [vmem:[#allocation5 + $0x28] sm:$0xf]
    %v68 = vld [vmem:[#allocation5 + $0x2c] sm:$0xf]
    %v69 = vld [vmem:[#allocation5 + $0x30] sm:$0xf]
    %v70 = vld [vmem:[#allocation5 + $0x34] sm:$0xf]
    %v71 = vld [vmem:[#allocation5 + $0x38] sm:$0xf]
    %v72 = vld [vmem:[#allocation5 + $0x3c] sm:$0xf]
    %v75 = vunpack.c.l.b16 %v55
    %v76 = vunpack.c.l.b16 %v56
    %v77 = vpack.c.b16 %v76, %v75
    %v95 = vunpack.c.l.b16 %v57
    %v96 = vunpack.c.l.b16 %v58
    %v97 = vunpack.c.l.b16 %v59
    %v98 = vunpack.c.l.b16 %v60
    %v99 = vunpack.c.l.b16 %v61
    %v100 = vunpack.c.l.b16 %v62
    %v101 = vunpack.c.l.b16 %v63
    %v102 = vunpack.c.l.b16 %v64
    %v103 = vunpack.c.l.b16 %v65
    %v104 = vunpack.c.l.b16 %v66
    %v105 = vunpack.c.l.b16 %v67
    %v106 = vunpack.c.l.b16 %v68
    %v107 = vunpack.c.l.b16 %v69
    %v108 = vunpack.c.l.b16 %v70
    %v109 = vunpack.c.l.b16 %v71
    %v110 = vunpack.c.l.b16 %v72
    %v111 = vpack.c.b16 %v96, %v95
    %v112 = vpack.c.b16 %v98, %v97
    %v113 = vpack.c.b16 %v100, %v99
    %v114 = vpack.c.b16 %v102, %v101
    %v115 = vpack.c.b16 %v104, %v103
    %v116 = vpack.c.b16 %v106, %v105
    %v117 = vpack.c.b16 %v108, %v107
    %v118 = vpack.c.b16 %v110, %v109
    %127 = vmatpush.bf16.msra.mxu0 %v118
    %128 = vmatpush.bf16.msra.mxu0 %v117
    %129 = vmatpush.bf16.msra.mxu0 %v116
    %130 = vmatpush.bf16.msra.mxu0 %v115
    %131 = vmatpush.bf16.msra.mxu0 %v114
    %132 = vmatpush.bf16.msra.mxu0 %v113
    %133 = vmatpush.bf16.msra.mxu0 %v112
    %134 = vmatpush.bf16.msra.mxu0 %v111
    %135 = vmatmul.bf16.gmra.mxu0 %v77
    %v136 = vpop.f32.mrf.mxu0
    %v137 = vadd.f32 0.0, %v136
    %v138 = vpop.f32.mrf.mxu0
    %v139 = vadd.f32 0.0, %v138
    %140 = vdwg.mxu0
    %v141 = vadd.f32 %v53, %v137
    %v142 = vadd.f32 %v54, %v139
    %143 = vst [vmem:[#allocation7] sm:$0xff] %v141
    %144 = vst [vmem:[#allocation7 + $0x8] sm:$0xff] %v142
    // Predicated region
    $region26: #{tpu_custom_call.1} parent=1 // pred_check
      %p145 = pneg %p47
    $region27: #{tpu_custom_call.1} parent=1 // pred_check_branch
      %147 = sbr.rel (%p145) target = $region29
    $region28: #{tpu_custom_call.1} parent=1 // pred_region
      %v148 = vld [vmem:[#allocation7] sm:$0xff]
      %v149 = vld [vmem:[#allocation7 + $0x8] sm:$0xff]
      %v150 = vpack.c.bf16 %v148, %v148
      %v151 = vpack.c.bf16 %v149, %v149
      %v152 = vld [vmem:[%s2] sm:$0x1]
      %v154 = vpack.i.b16 %v152, %v152
      %v156 = vperm.slane %v154, 0
      %v157 = vunpack.c.l.bf16 %v150
      %v158 = vunpack.c.l.bf16 %v151
      %v159 = vunpack.c.l.bf16 %v156
      %v160 = vadd.f32 %v157, %v159
      %v161 = vadd.f32 %v158, %v159
      %v162 = vpack.c.bf16 %v160, %v160
      %v163 = vpack.c.bf16 %v161, %v161
      %v164 = vunpack.c.l.bf16 %v162
      %v165 = vunpack.c.l.bf16 %v163
      %166 = vst [vmem:[#allocation7] sm:$0xff] %v164
      %167 = vst [vmem:[#allocation7 + $0x8] sm:$0xff] %v165
    $region29: #{tpu_custom_call.1} parent=1 // pred_fallthru
      _
    // Predicated region
    $region30: #{tpu_custom_call.1} parent=1 // pred_check
      _
    $region31: #{tpu_custom_call.1} parent=1 // pred_check_branch
      %169 = sbr.rel (0) target = $region33
    $region32: #{tpu_custom_call.1} parent=1 // pred_region
      %171 = vsyncadd [#allocation4], 0
      %s172 = sshll.u32 [#allocation7], 4
      %s173 = int_to_ptr.vmem [resolvable:$true] %s172
      %s174 = sshll.u32 %s3, 4
      %s175 = int_to_ptr.hbm [resolvable:$true] %s174
      %180 = dma.vmem_to_hbm [thread:$0]  %s173, 256, %s175, [#allocation4], 128, 128, 8
    $region33: #{tpu_custom_call.1} parent=1 // pred_fallthru
      _
    // Predicated region
    $region34: #{tpu_custom_call.1} parent=1 // pred_check
      _
    $region35: #{tpu_custom_call.1} parent=1 // pred_check_branch
      %182 = sbr.rel (0) target = $region37
    $region36: #{tpu_custom_call.1} parent=1 // pred_region
      %184 = dma.done [#allocation4], 256
    $region37: #{tpu_custom_call.1} parent=1 // pred_fallthru
      _
    %185 = vsyncpa [#allocation3], 1
    %186 = vsyncpa [#allocation6], 1
    %187 = vsyncpa [#allocation4], 1

</llo_original>
